<compile_context>
chip_gen: v5e
topology: v5e:2x2
jax: 0.10.0
libtpu: 0.0.40
codegen_flags: <defaults>
</compile_context>

<pallas_src>
import jax
import jax.numpy as jnp
from jax.experimental import pallas as pl
from jax.experimental.pallas import tpu as pltpu

_F = 128          # lane-dense feature width all layers are padded to
_TB_MAX = 4096    # batch-tile upper bound (safe for v7x's 64 MiB VMEM)


def _round_up(n, m):
    return ((n + m - 1) // m) * m


def _elementwise_dtype():
    """bf16 elementwise on chips with a bf16 VPU (v6e/v7x); f32 otherwise."""
    try:
        kind = jax.devices()[0].device_kind.lower()
    except Exception:
        kind = ""
    if any(tag in kind for tag in ("v6", "v7", "7x")):
        return jnp.bfloat16
    return jnp.float32


def _choose_tile(B):
    """Adaptive batch tile: bounded padding waste, >=2 grid steps when big."""
    if B <= 512:
        return max(8, _round_up(B, 8))
    steps = max(2, -(-B // _TB_MAX))            # ceil-div; megacore wants >=2
    tb = _round_up(-(-B // steps), 256)
    return min(tb, _TB_MAX)


def _mlp_kernel(x_ref,
                w1_ref, b1_ref,
                w2_ref, b2_ref,
                w3_ref, b3_ref,
                w4_ref, b4_ref,
                o_ref):
    # All matmuls: bf16 operands, f32 MXU accumulation.
    # Elementwise dtype (bias add / ReLU) is carried by the bias arrays:
    # f32 on v5e, bf16 on v6e/v7x.
    def layer(h_bf16, w_ref, b_ref):
        acc = jnp.dot(h_bf16, w_ref[...], preferred_element_type=jnp.float32)
        a = acc.astype(b_ref.dtype) + b_ref[...]
        return jnp.maximum(a, 0).astype(jnp.bfloat16)

    h = layer(x_ref[...], w1_ref, b1_ref)       # (tb, 128)
    h = layer(h, w2_ref, b2_ref)                # (tb, 128)
    h = layer(h, w3_ref, b3_ref)                # (tb, 128) (lanes 64+ are 0)
    out = jnp.dot(h, w4_ref[...], preferred_element_type=jnp.float32)
    o_ref[...] = (out + b4_ref[...]).astype(o_ref.dtype)   # (tb, 128) f32


def _pad2(a, shape, dtype):
    z = jnp.zeros(shape, dtype)
    return z.at[: a.shape[0], : a.shape[1]].set(a.astype(dtype))


def prepare_params(params):
    """One-time repack: bf16 weights zero-padded to 128x128, lane-dense biases."""
    cdt = _elementwise_dtype()
    return {
        "w1": _pad2(params["w1"], (_F, _F), jnp.bfloat16),   # (4,128) -> (128,128)
        "b1": _pad2(params["b1"], (1, _F), cdt),
        "w2": _pad2(params["w2"], (_F, _F), jnp.bfloat16),
        "b2": _pad2(params["b2"], (1, _F), cdt),
        "w3": _pad2(params["w3"], (_F, _F), jnp.bfloat16),   # (128,64) -> (128,128)
        "b3": _pad2(params["b3"], (1, _F), cdt),
        "w4": _pad2(params["w4"], (_F, _F), jnp.bfloat16),   # (64,4)  -> (128,128)
        "b4": _pad2(params["b4"], (1, _F), jnp.float32),     # final bias kept f32
    }


def mlp_forward(x, kp):
    """x: (B, 4) float32. kp: prepared params. Returns (B, 4) f32."""
    B = x.shape[0]
    tb = _choose_tile(B)
    Bp = _round_up(B, tb)

    # Lane-dense bf16 input slab: zero-pad features 4 -> 128 and batch B -> Bp.
    xp = jnp.zeros((Bp, _F), jnp.bfloat16).at[:B, :4].set(x.astype(jnp.bfloat16))

    grid = (Bp // tb,)
    const_spec = lambda shape: pl.BlockSpec(shape, lambda i: (0, 0))

    flops = 2 * Bp * _F * _F * 4
    bytes_accessed = (Bp * _F * 2          # x in (bf16)
                      + Bp * _F * 4        # out (f32)
                      + 4 * _F * _F * 2    # bf16 weights
                      + 4 * _F * 4)        # biases

    out = pl.pallas_call(
        _mlp_kernel,
        out_shape=jax.ShapeDtypeStruct((Bp, _F), jnp.float32),
        grid_spec=pltpu.PrefetchScalarGridSpec(
            num_scalar_prefetch=0,
            grid=grid,
            in_specs=[
                pl.BlockSpec((tb, _F), lambda i: (i, 0)),     # x (pipelined)
                const_spec((_F, _F)), const_spec((1, _F)),    # w1, b1 (VMEM-resident)
                const_spec((_F, _F)), const_spec((1, _F)),    # w2, b2
                const_spec((_F, _F)), const_spec((1, _F)),    # w3, b3
                const_spec((_F, _F)), const_spec((1, _F)),    # w4, b4
            ],
            out_specs=pl.BlockSpec((tb, _F), lambda i: (i, 0)),
        ),
        compiler_params=pltpu.CompilerParams(
            dimension_semantics=("parallel",),        # megacore split on v7x
            vmem_limit_bytes=48 * 1024 * 1024,
        ),
        cost_estimate=pl.CostEstimate(
            flops=flops, bytes_accessed=bytes_accessed, transcendentals=0),
    )(xp, kp["w1"], kp["b1"], kp["w2"], kp["b2"],
      kp["w3"], kp["b3"], kp["w4"], kp["b4"])

    return out[:B, :4]


mlp_forward_jit = jax.jit(mlp_forward)


def init_params(key):
    """Deterministic init mirroring nn.Linear shapes (stored transposed)."""
    sizes = [(4, 128), (128, 128), (128, 64), (64, 4)]
    params = {}
    for idx, (fan_in, fan_out) in enumerate(sizes, start=1):
        key, kw, kb = jax.random.split(key, 3)
        bound = 1.0 / jnp.sqrt(fan_in)
        params[f"w{idx}"] = jax.random.uniform(
            kw, (fan_in, fan_out), jnp.float32, -bound, bound)
        params[f"b{idx}"] = jax.random.uniform(
            kb, (1, fan_out), jnp.float32, -bound, bound)
    return params


def reference_forward(x, params):
    """Pure-f32 JAX reference (PyTorch forward semantics)."""
    h = jnp.maximum(x @ params["w1"] + params["b1"], 0.0)
    h = jnp.maximum(h @ params["w2"] + params["b2"], 0.0)
    h = jnp.maximum(h @ params["w3"] + params["b3"], 0.0)
    return h @ params["w4"] + params["b4"]


if __name__ == "__main__":
    key = jax.random.PRNGKey(0)
    key, kx1, kx2 = jax.random.split(key, 3)
    params = init_params(key)
    kp = prepare_params(params)

    # Small primary case (matches the module's (B, 4) input).
    batch = 8
    x = jax.random.normal(kx1, (batch, 4), jnp.float32)
    out = jax.block_until_ready(mlp_forward_jit(x, kp))
    ref = reference_forward(x, params)
    assert out.shape == (batch, 4)
    # bf16 MXU operands / bf16 input cast with f32 accumulation -> loose tol.
    assert jnp.allclose(out, ref, atol=5e-2, rtol=5e-2), \
        float(jnp.max(jnp.abs(out - ref)))

    # Larger, non-multiple-of-tile batch exercises padding + multi-step grid.
    batch2 = 1000
    x2 = jax.random.normal(kx2, (batch2, 4), jnp.float32)
    out2 = jax.block_until_ready(mlp_forward_jit(x2, kp))
    ref2 = reference_forward(x2, params)
    assert out2.shape == (batch2, 4)
    assert jnp.allclose(out2, ref2, atol=5e-2, rtol=5e-2), \
        float(jnp.max(jnp.abs(out2 - ref2)))

    print("KERNEL_OK")
</pallas_src>

<mosaic_0001>
module attributes {stable_mosaic.version = 11 : i64} {
  func.func @_mlp_kernel(%arg0: i32, %arg1: memref<8x128xbf16, #tpu.memory_space<vmem>>, %arg2: memref<128x128xbf16, #tpu.memory_space<vmem>>, %arg3: memref<1x128xf32, #tpu.memory_space<vmem>>, %arg4: memref<128x128xbf16, #tpu.memory_space<vmem>>, %arg5: memref<1x128xf32, #tpu.memory_space<vmem>>, %arg6: memref<128x128xbf16, #tpu.memory_space<vmem>>, %arg7: memref<1x128xf32, #tpu.memory_space<vmem>>, %arg8: memref<128x128xbf16, #tpu.memory_space<vmem>>, %arg9: memref<1x128xf32, #tpu.memory_space<vmem>>, %arg10: memref<8x128xf32, #tpu.memory_space<vmem>>) attributes {dimension_semantics = [#tpu.dimension_semantics<parallel>], iteration_bounds = array<i64: 1>, scalar_prefetch = 0 : i64, scratch_operands = 0 : i64, tpu.core_type = #tpu.core_type<tc>, window_params = [{transform_indices = @transform_0, window_bounds = array<i64: 8, 128>}, {pipeline_mode = #tpu.pipeline_mode<synchronous>, transform_indices = @transform_1, window_bounds = array<i64: 128, 128>}, {pipeline_mode = #tpu.pipeline_mode<synchronous>, transform_indices = @transform_2, window_bounds = array<i64: 1, 128>}, {pipeline_mode = #tpu.pipeline_mode<synchronous>, transform_indices = @transform_3, window_bounds = array<i64: 128, 128>}, {pipeline_mode = #tpu.pipeline_mode<synchronous>, transform_indices = @transform_4, window_bounds = array<i64: 1, 128>}, {pipeline_mode = #tpu.pipeline_mode<synchronous>, transform_indices = @transform_5, window_bounds = array<i64: 128, 128>}, {pipeline_mode = #tpu.pipeline_mode<synchronous>, transform_indices = @transform_6, window_bounds = array<i64: 1, 128>}, {pipeline_mode = #tpu.pipeline_mode<synchronous>, transform_indices = @transform_7, window_bounds = array<i64: 128, 128>}, {pipeline_mode = #tpu.pipeline_mode<synchronous>, transform_indices = @transform_8, window_bounds = array<i64: 1, 128>}, {transform_indices = @transform_9, window_bounds = array<i64: 8, 128>}]} {
    %c0 = arith.constant 0 : index
    %c0_0 = arith.constant 0 : index
    %0 = vector.load %arg1[%c0, %c0_0] : memref<8x128xbf16, #tpu.memory_space<vmem>>, vector<8x128xbf16>
    %c0_1 = arith.constant 0 : index
    %c0_2 = arith.constant 0 : index
    %1 = vector.load %arg2[%c0_1, %c0_2] : memref<128x128xbf16, #tpu.memory_space<vmem>>, vector<128x128xbf16>
    %cst = arith.constant dense<0.000000e+00> : vector<8x128xf32>
    %2 = tpu.matmul %0, %1, %cst {dimension_numbers = #tpu.dot_dimension_numbers<[1], [0], [0], [1], [0, 0, 1, 1], [], []>} : vector<8x128xbf16>, vector<128x128xbf16>, vector<8x128xf32> -> vector<8x128xf32>
    %c0_3 = arith.constant 0 : index
    %c0_4 = arith.constant 0 : index
    %3 = vector.load %arg3[%c0_3, %c0_4] : memref<1x128xf32, #tpu.memory_space<vmem>>, vector<1x128xf32>
    %4 = vector.broadcast %3 : vector<1x128xf32> to vector<8x128xf32>
    %5 = arith.addf %2, %4 : vector<8x128xf32>
    %cst_5 = arith.constant 0.000000e+00 : f32
    %6 = vector.broadcast %cst_5 : f32 to vector<8x128xf32>
    %7 = arith.maximumf %5, %6 : vector<8x128xf32>
    %8 = arith.truncf %7 : vector<8x128xf32> to vector<8x128xbf16>
    %c0_6 = arith.constant 0 : index
    %c0_7 = arith.constant 0 : index
    %9 = vector.load %arg4[%c0_6, %c0_7] : memref<128x128xbf16, #tpu.memory_space<vmem>>, vector<128x128xbf16>
    %cst_8 = arith.constant dense<0.000000e+00> : vector<8x128xf32>
    %10 = tpu.matmul %8, %9, %cst_8 {dimension_numbers = #tpu.dot_dimension_numbers<[1], [0], [0], [1], [0, 0, 1, 1], [], []>} : vector<8x128xbf16>, vector<128x128xbf16>, vector<8x128xf32> -> vector<8x128xf32>
    %c0_9 = arith.constant 0 : index
    %c0_10 = arith.constant 0 : index
    %11 = vector.load %arg5[%c0_9, %c0_10] : memref<1x128xf32, #tpu.memory_space<vmem>>, vector<1x128xf32>
    %12 = vector.broadcast %11 : vector<1x128xf32> to vector<8x128xf32>
    %13 = arith.addf %10, %12 : vector<8x128xf32>
    %cst_11 = arith.constant 0.000000e+00 : f32
    %14 = vector.broadcast %cst_11 : f32 to vector<8x128xf32>
    %15 = arith.maximumf %13, %14 : vector<8x128xf32>
    %16 = arith.truncf %15 : vector<8x128xf32> to vector<8x128xbf16>
    %c0_12 = arith.constant 0 : index
    %c0_13 = arith.constant 0 : index
    %17 = vector.load %arg6[%c0_12, %c0_13] : memref<128x128xbf16, #tpu.memory_space<vmem>>, vector<128x128xbf16>
    %cst_14 = arith.constant dense<0.000000e+00> : vector<8x128xf32>
    %18 = tpu.matmul %16, %17, %cst_14 {dimension_numbers = #tpu.dot_dimension_numbers<[1], [0], [0], [1], [0, 0, 1, 1], [], []>} : vector<8x128xbf16>, vector<128x128xbf16>, vector<8x128xf32> -> vector<8x128xf32>
    %c0_15 = arith.constant 0 : index
    %c0_16 = arith.constant 0 : index
    %19 = vector.load %arg7[%c0_15, %c0_16] : memref<1x128xf32, #tpu.memory_space<vmem>>, vector<1x128xf32>
    %20 = vector.broadcast %19 : vector<1x128xf32> to vector<8x128xf32>
    %21 = arith.addf %18, %20 : vector<8x128xf32>
    %cst_17 = arith.constant 0.000000e+00 : f32
    %22 = vector.broadcast %cst_17 : f32 to vector<8x128xf32>
    %23 = arith.maximumf %21, %22 : vector<8x128xf32>
    %24 = arith.truncf %23 : vector<8x128xf32> to vector<8x128xbf16>
    %c0_18 = arith.constant 0 : index
    %c0_19 = arith.constant 0 : index
    %25 = vector.load %arg8[%c0_18, %c0_19] : memref<128x128xbf16, #tpu.memory_space<vmem>>, vector<128x128xbf16>
    %cst_20 = arith.constant dense<0.000000e+00> : vector<8x128xf32>
    %26 = tpu.matmul %24, %25, %cst_20 {dimension_numbers = #tpu.dot_dimension_numbers<[1], [0], [0], [1], [0, 0, 1, 1], [], []>} : vector<8x128xbf16>, vector<128x128xbf16>, vector<8x128xf32> -> vector<8x128xf32>
    %c0_21 = arith.constant 0 : index
    %c0_22 = arith.constant 0 : index
    %27 = vector.load %arg9[%c0_21, %c0_22] : memref<1x128xf32, #tpu.memory_space<vmem>>, vector<1x128xf32>
    %28 = vector.broadcast %27 : vector<1x128xf32> to vector<8x128xf32>
    %29 = arith.addf %26, %28 : vector<8x128xf32>
    %c0_23 = arith.constant 0 : index
    %c0_24 = arith.constant 0 : index
    %30 = vector.load %arg10[%c0_23, %c0_24] : memref<8x128xf32, #tpu.memory_space<vmem>>, vector<8x128xf32>
    tpu.vector_store %arg10[%c0_23, %c0_24], %29 {strides = array<i32>} : memref<8x128xf32, #tpu.memory_space<vmem>>, vector<8x128xf32>,
    return
  }
  func.func @transform_0(%arg0: i32) -> (i32, i32) {
    %c0_i32 = arith.constant 0 : i32
    %c0_i32_0 = arith.constant 0 : i32
    return %arg0, %c0_i32 : i32, i32
  }
  func.func @transform_1(%arg0: i32) -> (i32, i32) {
    %c0_i32 = arith.constant 0 : i32
    %c0_i32_0 = arith.constant 0 : i32
    %c0_i32_1 = arith.constant 0 : i32
    return %c0_i32, %c0_i32_0 : i32, i32
  }
  func.func @transform_2(%arg0: i32) -> (i32, i32) {
    %c0_i32 = arith.constant 0 : i32
    %c0_i32_0 = arith.constant 0 : i32
    %c0_i32_1 = arith.constant 0 : i32
    return %c0_i32, %c0_i32_0 : i32, i32
  }
  func.func @transform_3(%arg0: i32) -> (i32, i32) {
    %c0_i32 = arith.constant 0 : i32
    %c0_i32_0 = arith.constant 0 : i32
    %c0_i32_1 = arith.constant 0 : i32
    return %c0_i32, %c0_i32_0 : i32, i32
  }
  func.func @transform_4(%arg0: i32) -> (i32, i32) {
    %c0_i32 = arith.constant 0 : i32
    %c0_i32_0 = arith.constant 0 : i32
    %c0_i32_1 = arith.constant 0 : i32
    return %c0_i32, %c0_i32_0 : i32, i32
  }
  func.func @transform_5(%arg0: i32) -> (i32, i32) {
    %c0_i32 = arith.constant 0 : i32
    %c0_i32_0 = arith.constant 0 : i32
    %c0_i32_1 = arith.constant 0 : i32
    return %c0_i32, %c0_i32_0 : i32, i32
  }
  func.func @transform_6(%arg0: i32) -> (i32, i32) {
    %c0_i32 = arith.constant 0 : i32
    %c0_i32_0 = arith.constant 0 : i32
    %c0_i32_1 = arith.constant 0 : i32
    return %c0_i32, %c0_i32_0 : i32, i32
  }
  func.func @transform_7(%arg0: i32) -> (i32, i32) {
    %c0_i32 = arith.constant 0 : i32
    %c0_i32_0 = arith.constant 0 : i32
    %c0_i32_1 = arith.constant 0 : i32
    return %c0_i32, %c0_i32_0 : i32, i32
  }
  func.func @transform_8(%arg0: i32) -> (i32, i32) {
    %c0_i32 = arith.constant 0 : i32
    %c0_i32_0 = arith.constant 0 : i32
    %c0_i32_1 = arith.constant 0 : i32
    return %c0_i32, %c0_i32_0 : i32, i32
  }
  func.func @transform_9(%arg0: i32) -> (i32, i32) {
    %c0_i32 = arith.constant 0 : i32
    %c0_i32_0 = arith.constant 0 : i32
    return %arg0, %c0_i32 : i32, i32
  }
}

</mosaic_0001>

<llo_original>
// kernel: mlp_forward.1
$region0: #{mlp_forward.1}
  #allocation0 [shape = 'u32[]', space=smem, size = 0x4, offset = 0x4, fixed_abs, tag = 'smem constant byte address 0x4 - core index']
  #allocation1 [shape = 'u32[72,128]{1,0:T(1,128)}', space=vmem, size = 0x9000, scoped, tag = 'internal scratch']
  %s0 = inlined_call_operand.vmem [shape: bf16[8,128], index: 0, kind: input, shape index: {}]
  %s1 = inlined_call_operand.hbm [shape: bf16[128,128], index: 1, kind: input, shape index: {}]
  %s2 = inlined_call_operand.vmem [shape: f32[1,128], index: 2, kind: input, shape index: {}]
  %s3 = inlined_call_operand.hbm [shape: bf16[128,128], index: 3, kind: input, shape index: {}]
  %s4 = inlined_call_operand.vmem [shape: f32[1,128], index: 4, kind: input, shape index: {}]
  %s5 = inlined_call_operand.hbm [shape: bf16[128,128], index: 5, kind: input, shape index: {}]
  %s6 = inlined_call_operand.vmem [shape: f32[1,128], index: 6, kind: input, shape index: {}]
  %s7 = inlined_call_operand.hbm [shape: bf16[128,128], index: 7, kind: input, shape index: {}]
  %s8 = inlined_call_operand.vmem [shape: f32[1,128], index: 8, kind: input, shape index: {}]
  %s9 = inlined_call_operand.vmem [shape: f32[8,128], index: 9, kind: output, shape index: {}]
  %s10 = sld [smem:[#allocation0]]
  $region62: #{mlp_forward.1} parent=0
    _
  %s12 = ssub.s32 1, %s10
  %s13 = scalar_select 0, %s12, %s10
  $region1: #{mlp_forward.1} parent=0
    #allocation2 [shape = 'u8[32768]{0}', space=vmem, size = 0x8000, scoped, tag = 'input window, operand 1, single buffered']
    #allocation3 [shape = 's32[1]{0}', space=sflag, size = 0x4, scoped, tag = 'scoped memory for mlp_forward.1']
    #allocation4 [shape = 'u8[32768]{0}', space=vmem, size = 0x8000, scoped, tag = 'input window, operand 3, single buffered']
    #allocation5 [shape = 's32[1]{0}', space=sflag, size = 0x4, scoped, tag = 'scoped memory for mlp_forward.1']
    #allocation6 [shape = 'u8[32768]{0}', space=vmem, size = 0x8000, scoped, tag = 'input window, operand 5, single buffered']
    #allocation7 [shape = 'u8[32768]{0}', space=vmem, size = 0x8000, scoped, tag = 'input window, operand 7, single buffered']
    #allocation8 [shape = 's32[1]{0}', space=sflag, size = 0x4, scoped, tag = 'scoped memory for mlp_forward.1']
    %14 = vsyncpa [#allocation3], 0
    %15 = vsyncpa [#allocation5], 0
    %16 = vsyncpa [#allocation8], 0
    // Predicated region
    $region2: #{mlp_forward.1} parent=1 // pred_check
      _
    $region3: #{mlp_forward.1} parent=1 // pred_check_branch
      %18 = sbr.rel (0) target = $region5
    $region4: #{mlp_forward.1} parent=1 // pred_region
      _
    $region5: #{mlp_forward.1} parent=1 // pred_fallthru
      _
    // Predicated region
    $region6: #{mlp_forward.1} parent=1 // pred_check
      _
    $region7: #{mlp_forward.1} parent=1 // pred_check_branch
      %20 = sbr.rel (0) target = $region9
    $region8: #{mlp_forward.1} parent=1 // pred_region
      %22 = vsyncadd [#allocation3], 0
      %s23 = sshll.u32 %s1, 4
      %s24 = int_to_ptr.hbm [resolvable:$true] %s23
      %s25 = sshll.u32 [#allocation2], 4
      %s26 = int_to_ptr.vmem [resolvable:$true] %s25
      %31 = dma.hbm_to_vmem [thread:$0]  %s24, 1024, %s26, [#allocation3], 64, 64, 4
    $region9: #{mlp_forward.1} parent=1 // pred_fallthru
      _
    // Predicated region
    $region10: #{mlp_forward.1} parent=1 // pred_check
      _
    $region11: #{mlp_forward.1} parent=1 // pred_check_branch
      %33 = sbr.rel (0) target = $region13
    $region12: #{mlp_forward.1} parent=1 // pred_region
      _
    $region13: #{mlp_forward.1} parent=1 // pred_fallthru
      _
    // Predicated region
    $region14: #{mlp_forward.1} parent=1 // pred_check
      _
    $region15: #{mlp_forward.1} parent=1 // pred_check_branch
      %35 = sbr.rel (0) target = $region17
    $region16: #{mlp_forward.1} parent=1 // pred_region
      %37 = vsyncadd [#allocation5], 0
      %s38 = sshll.u32 %s3, 4
      %s39 = int_to_ptr.hbm [resolvable:$true] %s38
      %s40 = sshll.u32 [#allocation4], 4
      %s41 = int_to_ptr.vmem [resolvable:$true] %s40
      %46 = dma.hbm_to_vmem [thread:$0]  %s39, 1024, %s41, [#allocation5], 64, 64, 4
    $region17: #{mlp_forward.1} parent=1 // pred_fallthru
      _
    // Predicated region
    $region18: #{mlp_forward.1} parent=1 // pred_check
      _
    $region19: #{mlp_forward.1} parent=1 // pred_check_branch
      %48 = sbr.rel (0) target = $region21
    $region20: #{mlp_forward.1} parent=1 // pred_region
      _
    $region21: #{mlp_forward.1} parent=1 // pred_fallthru
      _
    // Predicated region
    $region22: #{mlp_forward.1} parent=1 // pred_check
      _
    $region23: #{mlp_forward.1} parent=1 // pred_check_branch
      %50 = sbr.rel (0) target = $region25
    $region24: #{mlp_forward.1} parent=1 // pred_region
      %52 = vsyncadd [#allocation5], 0
      %s53 = sshll.u32 %s5, 4
      %s54 = int_to_ptr.hbm [resolvable:$true] %s53
      %s55 = sshll.u32 [#allocation6], 4
      %s56 = int_to_ptr.vmem [resolvable:$true] %s55
      %61 = dma.hbm_to_vmem [thread:$0]  %s54, 1024, %s56, [#allocation5], 64, 64, 4
    $region25: #{mlp_forward.1} parent=1 // pred_fallthru
      _
    // Predicated region
    $region26: #{mlp_forward.1} parent=1 // pred_check
      _
    $region27: #{mlp_forward.1} parent=1 // pred_check_branch
      %63 = sbr.rel (0) target = $region29
    $region28: #{mlp_forward.1} parent=1 // pred_region
      _
    $region29: #{mlp_forward.1} parent=1 // pred_fallthru
      _
    // Predicated region
    $region30: #{mlp_forward.1} parent=1 // pred_check
      _
    $region31: #{mlp_forward.1} parent=1 // pred_check_branch
      %65 = sbr.rel (0) target = $region33
    $region32: #{mlp_forward.1} parent=1 // pred_region
      %67 = vsyncadd [#allocation8], 0
      %s68 = sshll.u32 %s7, 4
      %s69 = int_to_ptr.hbm [resolvable:$true] %s68
      %s70 = sshll.u32 [#allocation7], 4
      %s71 = int_to_ptr.vmem [resolvable:$true] %s70
      %76 = dma.hbm_to_vmem [thread:$0]  %s69, 1024, %s71, [#allocation8], 64, 64, 4
    $region33: #{mlp_forward.1} parent=1 // pred_fallthru
      _
    // Predicated region
    $region34: #{mlp_forward.1} parent=1 // pred_check
      _
    $region35: #{mlp_forward.1} parent=1 // pred_check_branch
      %78 = sbr.rel (0) target = $region37
    $region36: #{mlp_forward.1} parent=1 // pred_region
      _
    $region37: #{mlp_forward.1} parent=1 // pred_fallthru
      _
    // Predicated region
    $region38: #{mlp_forward.1} parent=1 // pred_check
      _
    $region39: #{mlp_forward.1} parent=1 // pred_check_branch
      %80 = sbr.rel (0) target = $region41
    $region40: #{mlp_forward.1} parent=1 // pred_region
      %82 = dma.done [#allocation3], 1024
    $region41: #{mlp_forward.1} parent=1 // pred_fallthru
      _
    // Predicated region
    $region42: #{mlp_forward.1} parent=1 // pred_check
      _
    $region43: #{mlp_forward.1} parent=1 // pred_check_branch
      %84 = sbr.rel (0) target = $region45
    $region44: #{mlp_forward.1} parent=1 // pred_region
      %86 = dma.done [#allocation5], 1024
    $region45: #{mlp_forward.1} parent=1 // pred_fallthru
      _
    // Predicated region
    $region46: #{mlp_forward.1} parent=1 // pred_check
      _
    $region47: #{mlp_forward.1} parent=1 // pred_check_branch
      %88 = sbr.rel (0) target = $region49
    $region48: #{mlp_forward.1} parent=1 // pred_region
      %90 = dma.done [#allocation5], 1024
    $region49: #{mlp_forward.1} parent=1 // pred_fallthru
      _
    // Predicated region
    $region50: #{mlp_forward.1} parent=1 // pred_check
      _
    $region51: #{mlp_forward.1} parent=1 // pred_check_branch
      %92 = sbr.rel (0) target = $region53
    $region52: #{mlp_forward.1} parent=1 // pred_region
      %94 = dma.done [#allocation8], 1024
    $region53: #{mlp_forward.1} parent=1 // pred_fallthru
      _
    %v95 = vld [vmem:[%s0] sm:$0xf]
    %v96 = vld [vmem:[#allocation2] sm:$0xf]
    %v97 = vld [vmem:[#allocation2 + $0x4] sm:$0xf]
    %v98 = vld [vmem:[#allocation2 + $0x8] sm:$0xf]
    %v99 = vld [vmem:[#allocation2 + $0xc] sm:$0xf]
    %v100 = vld [vmem:[#allocation2 + $0x10] sm:$0xf]
    %v101 = vld [vmem:[#allocation2 + $0x14] sm:$0xf]
    %v102 = vld [vmem:[#allocation2 + $0x18] sm:$0xf]
    %v103 = vld [vmem:[#allocation2 + $0x1c] sm:$0xf]
    %v104 = vld [vmem:[#allocation2 + $0x20] sm:$0xf]
    %v105 = vld [vmem:[#allocation2 + $0x24] sm:$0xf]
    %v106 = vld [vmem:[#allocation2 + $0x28] sm:$0xf]
    %v107 = vld [vmem:[#allocation2 + $0x2c] sm:$0xf]
    %v108 = vld [vmem:[#allocation2 + $0x30] sm:$0xf]
    %v109 = vld [vmem:[#allocation2 + $0x34] sm:$0xf]
    %v110 = vld [vmem:[#allocation2 + $0x38] sm:$0xf]
    %v111 = vld [vmem:[#allocation2 + $0x3c] sm:$0xf]
    %v112 = vld [vmem:[%s2] sm:$0x1]
    %v114 = vperm.slane %v112, 0
    %v132 = vunpack.c.l.b16 %v96
    %v133 = vunpack.c.l.b16 %v97
    %v134 = vunpack.c.l.b16 %v98
    %v135 = vunpack.c.l.b16 %v99
    %v136 = vunpack.c.l.b16 %v100
    %v137 = vunpack.c.l.b16 %v101
    %v138 = vunpack.c.l.b16 %v102
    %v139 = vunpack.c.l.b16 %v103
    %v140 = vunpack.c.l.b16 %v104
    %v141 = vunpack.c.l.b16 %v105
    %v142 = vunpack.c.l.b16 %v106
    %v143 = vunpack.c.l.b16 %v107
    %v144 = vunpack.c.l.b16 %v108
    %v145 = vunpack.c.l.b16 %v109
    %v146 = vunpack.c.l.b16 %v110
    %v147 = vunpack.c.l.b16 %v111
    %v148 = vpack.c.b16 %v133, %v132
    %v149 = vpack.c.b16 %v135, %v134
    %v150 = vpack.c.b16 %v137, %v136
    %v151 = vpack.c.b16 %v139, %v138
    %v152 = vpack.c.b16 %v141, %v140
    %v153 = vpack.c.b16 %v143, %v142
    %v154 = vpack.c.b16 %v145, %v144
    %v155 = vpack.c.b16 %v147, %v146
    %164 = vmatpush.bf16.msra.mxu0 %v155
    %165 = vmatpush.bf16.msra.mxu0 %v154
    %166 = vmatpush.bf16.msra.mxu0 %v153
    %167 = vmatpush.bf16.msra.mxu0 %v152
    %168 = vmatpush.bf16.msra.mxu0 %v151
    %169 = vmatpush.bf16.msra.mxu0 %v150
    %170 = vmatpush.bf16.msra.mxu0 %v149
    %171 = vmatpush.bf16.msra.mxu0 %v148
    %172 = vmatmul.bf16.gmra.mxu0 %v95
    %v173 = vpop.f32.mrf.mxu0
    %v174 = vadd.f32 %v114, %v173
    %v175 = vpop.f32.mrf.mxu0
    %176 = vdwg.mxu0
    %v177 = vmax.f32 %v174, 0.0
    %v178 = vpack.c.bf16 %v177, %v177
    %v179 = vld [vmem:[#allocation4] sm:$0xf]
    %v180 = vld [vmem:[#allocation4 + $0x4] sm:$0xf]
    %v181 = vld [vmem:[#allocation4 + $0x8] sm:$0xf]
    %v182 = vld [vmem:[#allocation4 + $0xc] sm:$0xf]
    %v183 = vld [vmem:[#allocation4 + $0x10] sm:$0xf]
    %v184 = vld [vmem:[#allocation4 + $0x14] sm:$0xf]
    %v185 = vld [vmem:[#allocation4 + $0x18] sm:$0xf]
    %v186 = vld [vmem:[#allocation4 + $0x1c] sm:$0xf]
    %v187 = vld [vmem:[#allocation4 + $0x20] sm:$0xf]
    %v188 = vld [vmem:[#allocation4 + $0x24] sm:$0xf]
    %v189 = vld [vmem:[#allocation4 + $0x28] sm:$0xf]
    %v190 = vld [vmem:[#allocation4 + $0x2c] sm:$0xf]
    %v191 = vld [vmem:[#allocation4 + $0x30] sm:$0xf]
    %v192 = vld [vmem:[#allocation4 + $0x34] sm:$0xf]
    %v193 = vld [vmem:[#allocation4 + $0x38] sm:$0xf]
    %v194 = vld [vmem:[#allocation4 + $0x3c] sm:$0xf]
    %v195 = vld [vmem:[%s4] sm:$0x1]
    %v197 = vperm.slane %v195, 0
    %v215 = vunpack.c.l.b16 %v179
    %v216 = vunpack.c.l.b16 %v180
    %v217 = vunpack.c.l.b16 %v181
    %v218 = vunpack.c.l.b16 %v182
    %v219 = vunpack.c.l.b16 %v183
    %v220 = vunpack.c.l.b16 %v184
    %v221 = vunpack.c.l.b16 %v185
    %v222 = vunpack.c.l.b16 %v186
    %v223 = vunpack.c.l.b16 %v187
    %v224 = vunpack.c.l.b16 %v188
    %v225 = vunpack.c.l.b16 %v189
    %v226 = vunpack.c.l.b16 %v190
    %v227 = vunpack.c.l.b16 %v191
    %v228 = vunpack.c.l.b16 %v192
    %v229 = vunpack.c.l.b16 %v193
    %v230 = vunpack.c.l.b16 %v194
    %v231 = vpack.c.b16 %v216, %v215
    %v232 = vpack.c.b16 %v218, %v217
    %v233 = vpack.c.b16 %v220, %v219
    %v234 = vpack.c.b16 %v222, %v221
    %v235 = vpack.c.b16 %v224, %v223
    %v236 = vpack.c.b16 %v226, %v225
    %v237 = vpack.c.b16 %v228, %v227
    %v238 = vpack.c.b16 %v230, %v229
    %247 = vmatpush.bf16.msra.mxu0 %v238
    %248 = vmatpush.bf16.msra.mxu0 %v237
    %249 = vmatpush.bf16.msra.mxu0 %v236
    %250 = vmatpush.bf16.msra.mxu0 %v235
    %251 = vmatpush.bf16.msra.mxu0 %v234
    %252 = vmatpush.bf16.msra.mxu0 %v233
    %253 = vmatpush.bf16.msra.mxu0 %v232
    %254 = vmatpush.bf16.msra.mxu0 %v231
    %255 = vmatmul.bf16.gmra.mxu0 %v178
    %v256 = vpop.f32.mrf.mxu0
    %v257 = vadd.f32 %v197, %v256
    %v258 = vpop.f32.mrf.mxu0
    %259 = vdwg.mxu0
    %v260 = vmax.f32 %v257, 0.0
    %v261 = vpack.c.bf16 %v260, %v260
    %v262 = vld [vmem:[#allocation6] sm:$0xf]
    %v263 = vld [vmem:[#allocation6 + $0x4] sm:$0xf]
    %v264 = vld [vmem:[#allocation6 + $0x8] sm:$0xf]
    %v265 = vld [vmem:[#allocation6 + $0xc] sm:$0xf]
    %v266 = vld [vmem:[#allocation6 + $0x10] sm:$0xf]
    %v267 = vld [vmem:[#allocation6 + $0x14] sm:$0xf]
    %v268 = vld [vmem:[#allocation6 + $0x18] sm:$0xf]
    %v269 = vld [vmem:[#allocation6 + $0x1c] sm:$0xf]
    %v270 = vld [vmem:[#allocation6 + $0x20] sm:$0xf]
    %v271 = vld [vmem:[#allocation6 + $0x24] sm:$0xf]
    %v272 = vld [vmem:[#allocation6 + $0x28] sm:$0xf]
    %v273 = vld [vmem:[#allocation6 + $0x2c] sm:$0xf]
    %v274 = vld [vmem:[#allocation6 + $0x30] sm:$0xf]
    %v275 = vld [vmem:[#allocation6 + $0x34] sm:$0xf]
    %v276 = vld [vmem:[#allocation6 + $0x38] sm:$0xf]
    %v277 = vld [vmem:[#allocation6 + $0x3c] sm:$0xf]
    %v278 = vld [vmem:[%s6] sm:$0x1]
    %v280 = vperm.slane %v278, 0
    %v298 = vunpack.c.l.b16 %v262
    %v299 = vunpack.c.l.b16 %v263
    %v300 = vunpack.c.l.b16 %v264
    %v301 = vunpack.c.l.b16 %v265
    %v302 = vunpack.c.l.b16 %v266
    %v303 = vunpack.c.l.b16 %v267
    %v304 = vunpack.c.l.b16 %v268
    %v305 = vunpack.c.l.b16 %v269
    %v306 = vunpack.c.l.b16 %v270
    %v307 = vunpack.c.l.b16 %v271
    %v308 = vunpack.c.l.b16 %v272
    %v309 = vunpack.c.l.b16 %v273
    %v310 = vunpack.c.l.b16 %v274
    %v311 = vunpack.c.l.b16 %v275
    %v312 = vunpack.c.l.b16 %v276
    %v313 = vunpack.c.l.b16 %v277
    %v314 = vpack.c.b16 %v299, %v298
    %v315 = vpack.c.b16 %v301, %v300
    %v316 = vpack.c.b16 %v303, %v302
    %v317 = vpack.c.b16 %v305, %v304
    %v318 = vpack.c.b16 %v307, %v306
    %v319 = vpack.c.b16 %v309, %v308
    %v320 = vpack.c.b16 %v311, %v310
    %v321 = vpack.c.b16 %v313, %v312
    %330 = vmatpush.bf16.msra.mxu0 %v321
    %331 = vmatpush.bf16.msra.mxu0 %v320
    %332 = vmatpush.bf16.msra.mxu0 %v319
    %333 = vmatpush.bf16.msra.mxu0 %v318
    %334 = vmatpush.bf16.msra.mxu0 %v317
    %335 = vmatpush.bf16.msra.mxu0 %v316
    %336 = vmatpush.bf16.msra.mxu0 %v315
    %337 = vmatpush.bf16.msra.mxu0 %v314
    %338 = vmatmul.bf16.gmra.mxu0 %v261
    %v339 = vpop.f32.mrf.mxu0
    %v340 = vadd.f32 %v280, %v339
    %v341 = vpop.f32.mrf.mxu0
    %342 = vdwg.mxu0
    %v343 = vmax.f32 %v340, 0.0
    %v344 = vpack.c.bf16 %v343, %v343
    %v345 = vld [vmem:[#allocation7] sm:$0xf]
    %v346 = vld [vmem:[#allocation7 + $0x4] sm:$0xf]
    %v347 = vld [vmem:[#allocation7 + $0x8] sm:$0xf]
    %v348 = vld [vmem:[#allocation7 + $0xc] sm:$0xf]
    %v349 = vld [vmem:[#allocation7 + $0x10] sm:$0xf]
    %v350 = vld [vmem:[#allocation7 + $0x14] sm:$0xf]
    %v351 = vld [vmem:[#allocation7 + $0x18] sm:$0xf]
    %v352 = vld [vmem:[#allocation7 + $0x1c] sm:$0xf]
    %v353 = vld [vmem:[#allocation7 + $0x20] sm:$0xf]
    %v354 = vld [vmem:[#allocation7 + $0x24] sm:$0xf]
    %v355 = vld [vmem:[#allocation7 + $0x28] sm:$0xf]
    %v356 = vld [vmem:[#allocation7 + $0x2c] sm:$0xf]
    %v357 = vld [vmem:[#allocation7 + $0x30] sm:$0xf]
    %v358 = vld [vmem:[#allocation7 + $0x34] sm:$0xf]
    %v359 = vld [vmem:[#allocation7 + $0x38] sm:$0xf]
    %v360 = vld [vmem:[#allocation7 + $0x3c] sm:$0xf]
    %v361 = vld [vmem:[%s8] sm:$0x1]
    %v363 = vperm.slane %v361, 0
    %v381 = vunpack.c.l.b16 %v345
    %v382 = vunpack.c.l.b16 %v346
    %v383 = vunpack.c.l.b16 %v347
    %v384 = vunpack.c.l.b16 %v348
    %v385 = vunpack.c.l.b16 %v349
    %v386 = vunpack.c.l.b16 %v350
    %v387 = vunpack.c.l.b16 %v351
    %v388 = vunpack.c.l.b16 %v352
    %v389 = vunpack.c.l.b16 %v353
    %v390 = vunpack.c.l.b16 %v354
    %v391 = vunpack.c.l.b16 %v355
    %v392 = vunpack.c.l.b16 %v356
    %v393 = vunpack.c.l.b16 %v357
    %v394 = vunpack.c.l.b16 %v358
    %v395 = vunpack.c.l.b16 %v359
    %v396 = vunpack.c.l.b16 %v360
    %v397 = vpack.c.b16 %v382, %v381
    %v398 = vpack.c.b16 %v384, %v383
    %v399 = vpack.c.b16 %v386, %v385
    %v400 = vpack.c.b16 %v388, %v387
    %v401 = vpack.c.b16 %v390, %v389
    %v402 = vpack.c.b16 %v392, %v391
    %v403 = vpack.c.b16 %v394, %v393
    %v404 = vpack.c.b16 %v396, %v395
    %413 = vmatpush.bf16.msra.mxu0 %v404
    %414 = vmatpush.bf16.msra.mxu0 %v403
    %415 = vmatpush.bf16.msra.mxu0 %v402
    %416 = vmatpush.bf16.msra.mxu0 %v401
    %417 = vmatpush.bf16.msra.mxu0 %v400
    %418 = vmatpush.bf16.msra.mxu0 %v399
    %419 = vmatpush.bf16.msra.mxu0 %v398
    %420 = vmatpush.bf16.msra.mxu0 %v397
    %421 = vmatmul.bf16.gmra.mxu0 %v344
    %v422 = vpop.f32.mrf.mxu0
    %v423 = vadd.f32 %v363, %v422
    %v424 = vpop.f32.mrf.mxu0
    %425 = vdwg.mxu0
    %426 = vst [vmem:[%s9] sm:$0xff] %v423
    // Predicated region
    $region54: #{mlp_forward.1} parent=1 // pred_check
      _
    $region55: #{mlp_forward.1} parent=1 // pred_check_branch
      %428 = sbr.rel (0) target = $region57
    $region56: #{mlp_forward.1} parent=1 // pred_region
      _
    $region57: #{mlp_forward.1} parent=1 // pred_fallthru
      _
    // Predicated region
    $region58: #{mlp_forward.1} parent=1 // pred_check
      _
    $region59: #{mlp_forward.1} parent=1 // pred_check_branch
      %430 = sbr.rel (0) target = $region61
    $region60: #{mlp_forward.1} parent=1 // pred_region
      _
    $region61: #{mlp_forward.1} parent=1 // pred_fallthru
      _
    %431 = vsyncpa [#allocation3], 1
    %432 = vsyncpa [#allocation5], 1
    %433 = vsyncpa [#allocation8], 1

</llo_original>
